<compile_context>
chip_gen: v7x
topology: tpu7x:2x2x1
jax: 0.10.0
libtpu: 0.0.40
codegen_flags: <defaults>
</compile_context>

<pallas_src>
import functools

import jax
import jax.numpy as jnp
from jax import lax
from jax.experimental import pallas as pl
from jax.experimental.pallas import tpu as pltpu


# ----------------------------- helpers --------------------------------------

def _round_up(n, m):
    return (n + m - 1) // m * m


def _pad_gate_cols(w, H, Hp):
    """w: (..., 4H) in PyTorch gate order [i, f, g, o] along the last axis.
    Zero-pad each gate's H-wide block to Hp so every gate boundary lands on a
    lane-aligned (multiple-of-128) offset."""
    if Hp == H:
        return w
    pad = [(0, 0)] * (w.ndim - 1) + [(0, Hp - H)]
    blocks = [jnp.pad(w[..., g * H:(g + 1) * H], pad) for g in range(4)]
    return jnp.concatenate(blocks, axis=-1)


def _sigmoid(x):
    # Exact sigmoid as one EUP transcendental (tanh) + cheap VPU ops.
    return 0.5 * jnp.tanh(0.5 * x) + 0.5


# ----------------------------- Pallas kernel --------------------------------

def lstm_recurrent_kernel(xproj_ref, whh_ref, hT_ref, h_sc, c_sc,
                          *, t_chunk, seq_len):
    # grid = (batch_tiles, time_chunks); time is the trailing "arbitrary" axis,
    # so for each batch tile the chunks run in order and h/c persist in scratch.
    ci = pl.program_id(1)

    @pl.when(ci == 0)
    def _():
        h_sc[...] = jnp.zeros_like(h_sc)
        c_sc[...] = jnp.zeros_like(c_sc)

    Hp = h_sc.shape[-1]

    # Read the carries once; keep them in vregs across the whole chunk.
    h0 = h_sc[...]
    c0 = c_sc[...]

    # Tail handling: only the first `steps` timesteps of the last chunk are
    # real data (the wrapper zero-pads the time axis to n_chunks * t_chunk).
    steps = jnp.minimum(t_chunk, seq_len - ci * t_chunk)

    def step(t, carry):
        h, c = carry
        # One (Bt, Hp) @ (Hp, 4Hp) MXU pass per step; x @ W_ih^T + b was
        # hoisted out of the recurrence (xproj_ref[t] is (Bt, 4Hp)).
        gates = xproj_ref[t] + jnp.dot(h, whh_ref[...],
                                       preferred_element_type=jnp.float32)
        # Lane-aligned gate slices (each gate block is exactly Hp lanes wide).
        i_g = _sigmoid(gates[:, 0 * Hp:1 * Hp])
        f_g = _sigmoid(gates[:, 1 * Hp:2 * Hp])
        g_g = jnp.tanh(gates[:, 2 * Hp:3 * Hp])
        o_g = _sigmoid(gates[:, 3 * Hp:4 * Hp])
        c_new = f_g * c + i_g * g_g
        h_new = o_g * jnp.tanh(c_new)
        return h_new, c_new

    # TODO(synk): at tiny batch the per-step MXU cost is dominated by streaming
    # the constant W_hh through the array; pltpu.matmul_push_rhs/acc_lhs/pop
    # could hold it resident across the chunk. Kept on the standard jnp.dot
    # lowering here for robustness.
    h_f, c_f = lax.fori_loop(0, steps, step, (h0, c0))

    # Write the carries back once per chunk (cross-chunk persistence only).
    h_sc[...] = h_f
    c_sc[...] = c_f

    # Emit the (lane-dense) last hidden state once, on the final time chunk.
    @pl.when(ci == pl.num_programs(1) - 1)
    def _():
        hT_ref[...] = h_f.astype(hT_ref.dtype)


# ----------------------------- wrapper ---------------------------------------

def lstm_model_forward(x, params, *, t_chunk=None, vmem_budget_bytes=32 << 20):
    """x: (B, T, I) float32 (batch_first, like PyTorch). Returns (B, O)."""
    B, T, I = x.shape
    w_ih, w_hh, b_ih, b_hh, w_fc, b_fc = (
        params["w_ih"], params["w_hh"], params["b_ih"],
        params["b_hh"], params["w_fc"], params["b_fc"])
    H = w_hh.shape[1]
    Hp = _round_up(H, 128)          # lane-aligned per-gate width

    # Batch: pad to full sublanes; with B >= 16 use two batch tiles so the
    # "parallel" grid axis can shard across v7x's two TensorCores (on 1-TC
    # chips the extra tile only costs n_chunks more grid steps).
    if B >= 16:
        Bp = _round_up(B, 16)
        n_btiles = 2
    else:
        Bp = _round_up(B, 8)
        n_btiles = 1
    Bt = Bp // n_btiles

    # Gate-blocked, lane-padded weights / bias (zero padding is inert: padded
    # gates stay at sigmoid(0)/tanh(0) and padded h/c columns stay 0).
    wih_p = _pad_gate_cols(jnp.transpose(w_ih), H, Hp)                   # (I, 4Hp)
    whh_p = jnp.pad(_pad_gate_cols(jnp.transpose(w_hh), H, Hp),
                    ((0, Hp - H), (0, 0)))                               # (Hp, 4Hp)
    b_p = _pad_gate_cols((b_ih + b_hh).reshape(1, 4 * H), H, Hp)         # (1, 4Hp)

    # Hoisted input projection: ONE batched matmul over all timesteps (off the
    # serial path), emitted time-major (T, Bp, 4Hp) with the bias folded in.
    # TODO(synk): cast x_proj to bf16 to halve HBM/VMEM traffic if ~1e-3
    # pre-activation error is acceptable (kept f32 to match the reference).
    x_pad = x if Bp == B else jnp.pad(x, ((0, Bp - B), (0, 0), (0, 0)))
    x_proj = jnp.einsum("bti,ig->tbg", x_pad, wih_p,
                        preferred_element_type=jnp.float32,
                        precision=lax.Precision.HIGHEST) + b_p           # (T, Bp, 4Hp)

    # Single-buffer the constant-index weight block once double-buffering it
    # would waste meaningful VMEM (the block index never changes, so no
    # pipelining is needed); keep the known-good default for small weights.
    whh_bytes = Hp * 4 * Hp * 4
    single_buffer_w = whh_bytes > (2 << 20)
    n_w_bufs = 1 if single_buffer_w else 2

    # VMEM-budget-driven time chunk: amortizes the ~0.35us/grid-step overhead
    # even for awkward/prime T and keeps big shapes inside v7x's 64 MiB VMEM.
    bpe = 4  # f32
    fixed_bytes = (n_w_bufs * whh_bytes            # W_hh buffer(s)
                   + 2 * Bt * Hp * bpe             # h/c scratch
                   + 2 * Bt * Hp * bpe)            # output block (double-buffered)
    per_step_bytes = 2 * Bt * 4 * Hp * bpe         # x_proj (double-buffered)
    if t_chunk is None:
        avail = max(vmem_budget_bytes - fixed_bytes, 8 * per_step_bytes)
        t_chunk = int(max(8, min(avail // per_step_bytes, 512, T)))

    # cdiv chunking + zero-pad the time axis; tail steps are skipped in-kernel.
    n_chunks = pl.cdiv(T, t_chunk)
    Tp = n_chunks * t_chunk
    if Tp != T:
        x_proj = jnp.pad(x_proj, ((0, Tp - T), (0, 0), (0, 0)))

    whh_spec_kwargs = {}
    if single_buffer_w:
        whh_spec_kwargs["pipeline_mode"] = pl.Buffered(1)

    grid_spec = pltpu.PrefetchScalarGridSpec(
        num_scalar_prefetch=0,
        grid=(n_btiles, n_chunks),
        in_specs=[
            pl.BlockSpec((t_chunk, Bt, 4 * Hp), lambda bi, ci: (ci, bi, 0)),
            pl.BlockSpec((Hp, 4 * Hp), lambda bi, ci: (0, 0),
                         **whh_spec_kwargs),
        ],
        out_specs=pl.BlockSpec((Bt, Hp), lambda bi, ci: (bi, 0)),
        scratch_shapes=[
            pltpu.VMEM((Bt, Hp), jnp.float32),   # h carry (cross-chunk)
            pltpu.VMEM((Bt, Hp), jnp.float32),   # c carry (cross-chunk)
        ],
    )

    # Explicit scoped-VMEM limit from the actual footprint (default scoped
    # limits are 16 MiB on v5e / 32 MiB on v6e & v7x; v7x physical is 64 MiB).
    footprint = fixed_bytes + per_step_bytes * t_chunk
    vmem_limit = int(min(max(footprint + (4 << 20), 16 << 20), 64 << 20))

    kernel = functools.partial(lstm_recurrent_kernel,
                               t_chunk=t_chunk, seq_len=T)

    h_T = pl.pallas_call(
        kernel,
        out_shape=jax.ShapeDtypeStruct((Bp, Hp), jnp.float32),
        grid_spec=grid_spec,
        compiler_params=pltpu.CompilerParams(
            dimension_semantics=("parallel", "arbitrary"),
            vmem_limit_bytes=vmem_limit),
    )(x_proj, whh_p)

    # Tiny final Linear (O << 128): done in XLA so the kernel's output stays
    # lane-dense instead of forcing a masked sub-128 store.
    return jnp.dot(h_T[:B, :H], jnp.transpose(w_fc),
                   precision=lax.Precision.HIGHEST) + b_fc


# ----------------------------- reference & init ------------------------------

def lstm_model_reference(x, params):
    """Pure-JAX reference matching PyTorch nn.LSTM (batch_first) + nn.Linear."""
    w_ih, w_hh, b_ih, b_hh, w_fc, b_fc = (
        params["w_ih"], params["w_hh"], params["b_ih"],
        params["b_hh"], params["w_fc"], params["b_fc"])
    B, T, I = x.shape
    H = w_hh.shape[1]
    hi = lax.Precision.HIGHEST

    def step(carry, x_t):
        h, c = carry
        gates = (jnp.dot(x_t, w_ih.T, precision=hi)
                 + jnp.dot(h, w_hh.T, precision=hi) + b_ih + b_hh)
        i_g = jax.nn.sigmoid(gates[:, 0 * H:1 * H])
        f_g = jax.nn.sigmoid(gates[:, 1 * H:2 * H])
        g_g = jnp.tanh(gates[:, 2 * H:3 * H])
        o_g = jax.nn.sigmoid(gates[:, 3 * H:4 * H])
        c = f_g * c + i_g * g_g
        h = o_g * jnp.tanh(c)
        return (h, c), None

    h0 = jnp.zeros((B, H), jnp.float32)
    c0 = jnp.zeros((B, H), jnp.float32)
    (h_T, _), _ = lax.scan(step, (h0, c0), jnp.transpose(x, (1, 0, 2)))
    return jnp.dot(h_T, w_fc.T, precision=hi) + b_fc


def init_params(key, input_size, hidden_size, output_size):
    """Deterministic init matching PyTorch shapes (uniform +-1/sqrt(H))."""
    H = hidden_size
    k = 1.0 / jnp.sqrt(jnp.float32(H))
    ks = jax.random.split(key, 6)
    return {
        "w_ih": jax.random.uniform(ks[0], (4 * H, input_size), jnp.float32, -k, k),
        "w_hh": jax.random.uniform(ks[1], (4 * H, H), jnp.float32, -k, k),
        "b_ih": jax.random.uniform(ks[2], (4 * H,), jnp.float32, -k, k),
        "b_hh": jax.random.uniform(ks[3], (4 * H,), jnp.float32, -k, k),
        "w_fc": jax.random.uniform(ks[4], (output_size, H), jnp.float32, -k, k),
        "b_fc": jax.random.uniform(ks[5], (output_size,), jnp.float32, -k, k),
    }


if __name__ == "__main__":
    # Small shapes consistent with the module's forward: (B, T, input_size).
    B, T, I, H, O = 2, 8, 16, 32, 4

    key = jax.random.PRNGKey(0)
    k_x, k_x2, k_p = jax.random.split(key, 3)
    x = jax.random.normal(k_x, (B, T, I), jnp.float32)
    params = init_params(k_p, I, H, O)

    # Primary check: single chunk, single batch tile.
    fwd = jax.jit(lstm_model_forward)
    out = jax.block_until_ready(fwd(x, params))
    ref = lstm_model_reference(x, params)
    assert out.shape == (B, O)
    assert jnp.allclose(out, ref, atol=1e-4, rtol=1e-4), "mismatch vs reference"

    # Secondary check: non-divisible T (tail masking), multiple time chunks,
    # and two batch tiles (the v7x-parallel grid path), in one extra compile.
    B2, T2 = 16, 13
    x2 = jax.random.normal(k_x2, (B2, T2, I), jnp.float32)
    fwd2 = jax.jit(functools.partial(lstm_model_forward, t_chunk=5))
    out2 = jax.block_until_ready(fwd2(x2, params))
    ref2 = lstm_model_reference(x2, params)
    assert out2.shape == (B2, O)
    assert jnp.allclose(out2, ref2, atol=1e-4, rtol=1e-4), "mismatch (tail/tiled)"

    print("KERNEL_OK")
</pallas_src>

<mosaic_0001>
module attributes {stable_mosaic.version = 11 : i64} {
  func.func @lstm_recurrent_kernel(%arg0: i32, %arg1: i32, %arg2: memref<8x8x512xf32, #tpu.memory_space<vmem>>, %arg3: memref<128x512xf32, #tpu.memory_space<vmem>>, %arg4: memref<8x128xf32, #tpu.memory_space<vmem>>, %arg5: memref<8x128xf32, #tpu.memory_space<vmem>>, %arg6: memref<8x128xf32, #tpu.memory_space<vmem>>) attributes {dimension_semantics = [#tpu.dimension_semantics<parallel>, #tpu.dimension_semantics<arbitrary>], iteration_bounds = array<i64: 1, 1>, scalar_prefetch = 0 : i64, scratch_operands = 2 : i64, tpu.core_type = #tpu.core_type<tc>, window_params = [{transform_indices = @transform_0, window_bounds = array<i64: 8, 8, 512>}, {pipeline_mode = #tpu.pipeline_mode<synchronous>, transform_indices = @transform_1, window_bounds = array<i64: 128, 512>}, {transform_indices = @transform_2, window_bounds = array<i64: 8, 128>}]} {
    %c0_i32 = arith.constant 0 : i32
    %0 = arith.cmpi eq, %arg1, %c0_i32 : i32
    %1 = arith.extui %0 : i1 to i32
    %c0_i32_0 = arith.constant 0 : i32
    %2 = arith.cmpi ne, %1, %c0_i32_0 : i32
    scf.if %2 {
      %cst = arith.constant 0.000000e+00 : f32
      %16 = vector.broadcast %cst : f32 to vector<8x128xf32>
      %c0_13 = arith.constant 0 : index
      %c0_14 = arith.constant 0 : index
      %17 = vector.load %arg5[%c0_13, %c0_14] : memref<8x128xf32, #tpu.memory_space<vmem>>, vector<8x128xf32>
      tpu.vector_store %arg5[%c0_13, %c0_14], %16 {strides = array<i32>} : memref<8x128xf32, #tpu.memory_space<vmem>>, vector<8x128xf32>,
      %cst_15 = arith.constant 0.000000e+00 : f32
      %18 = vector.broadcast %cst_15 : f32 to vector<8x128xf32>
      %c0_16 = arith.constant 0 : index
      %c0_17 = arith.constant 0 : index
      %19 = vector.load %arg6[%c0_16, %c0_17] : memref<8x128xf32, #tpu.memory_space<vmem>>, vector<8x128xf32>
      tpu.vector_store %arg6[%c0_16, %c0_17], %18 {strides = array<i32>} : memref<8x128xf32, #tpu.memory_space<vmem>>, vector<8x128xf32>,
    } else {
    }
    %c0 = arith.constant 0 : index
    %c0_1 = arith.constant 0 : index
    %3 = vector.load %arg5[%c0, %c0_1] : memref<8x128xf32, #tpu.memory_space<vmem>>, vector<8x128xf32>
    %c0_2 = arith.constant 0 : index
    %c0_3 = arith.constant 0 : index
    %4 = vector.load %arg6[%c0_2, %c0_3] : memref<8x128xf32, #tpu.memory_space<vmem>>, vector<8x128xf32>
    %c8_i32 = arith.constant 8 : i32
    %5 = arith.muli %arg1, %c8_i32 : i32
    %c8_i32_4 = arith.constant 8 : i32
    %6 = arith.subi %c8_i32_4, %5 : i32
    %c8_i32_5 = arith.constant 8 : i32
    %7 = arith.minsi %c8_i32_5, %6 : i32
    %c0_i32_6 = arith.constant 0 : i32
    %8 = arith.subi %7, %c0_i32_6 : i32
    %9 = arith.addi %c0_i32_6, %8 : i32
    %c1_i32 = arith.constant 1 : i32
    %10:2 = scf.for %arg7 = %c0_i32_6 to %9 step %c1_i32 iter_args(%arg8 = %3, %arg9 = %4) -> (vector<8x128xf32>, vector<8x128xf32>)  : i32 {
      %16 = arith.index_cast %arg7 : i32 to index
      %c0_13 = arith.constant 0 : index
      %c0_14 = arith.constant 0 : index
      %17 = vector.load %arg2[%16, %c0_13, %c0_14] : memref<8x8x512xf32, #tpu.memory_space<vmem>>, vector<1x8x512xf32>
      %18 = vector.shape_cast %17 : vector<1x8x512xf32> to vector<8x512xf32>
      %c0_15 = arith.constant 0 : index
      %c0_16 = arith.constant 0 : index
      %19 = vector.load %arg3[%c0_15, %c0_16] : memref<128x512xf32, #tpu.memory_space<vmem>>, vector<128x512xf32>
      %cst = arith.constant dense<0.000000e+00> : vector<8x512xf32>
      %20 = tpu.matmul %arg8, %19, %cst {dimension_numbers = #tpu.dot_dimension_numbers<[1], [0], [0], [1], [0, 0, 1, 1], [], []>} : vector<8x128xf32>, vector<128x512xf32>, vector<8x512xf32> -> vector<8x512xf32>
      %21 = arith.addf %18, %20 : vector<8x512xf32>
      %22 = vector.extract_strided_slice %21 {offsets = [0, 0], sizes = [8, 128], strides = [1, 1]} : vector<8x512xf32> to vector<8x128xf32>
      %cst_17 = arith.constant 5.000000e-01 : f32
      %23 = vector.broadcast %cst_17 : f32 to vector<8x128xf32>
      %24 = arith.mulf %23, %22 : vector<8x128xf32>
      %25 = math.tanh %24 : vector<8x128xf32>
      %cst_18 = arith.constant 5.000000e-01 : f32
      %26 = vector.broadcast %cst_18 : f32 to vector<8x128xf32>
      %27 = arith.mulf %26, %25 : vector<8x128xf32>
      %cst_19 = arith.constant 5.000000e-01 : f32
      %28 = vector.broadcast %cst_19 : f32 to vector<8x128xf32>
      %29 = arith.addf %27, %28 : vector<8x128xf32>
      %30 = vector.extract_strided_slice %21 {offsets = [0, 128], sizes = [8, 128], strides = [1, 1]} : vector<8x512xf32> to vector<8x128xf32>
      %cst_20 = arith.constant 5.000000e-01 : f32
      %31 = vector.broadcast %cst_20 : f32 to vector<8x128xf32>
      %32 = arith.mulf %31, %30 : vector<8x128xf32>
      %33 = math.tanh %32 : vector<8x128xf32>
      %cst_21 = arith.constant 5.000000e-01 : f32
      %34 = vector.broadcast %cst_21 : f32 to vector<8x128xf32>
      %35 = arith.mulf %34, %33 : vector<8x128xf32>
      %cst_22 = arith.constant 5.000000e-01 : f32
      %36 = vector.broadcast %cst_22 : f32 to vector<8x128xf32>
      %37 = arith.addf %35, %36 : vector<8x128xf32>
      %38 = vector.extract_strided_slice %21 {offsets = [0, 256], sizes = [8, 128], strides = [1, 1]} : vector<8x512xf32> to vector<8x128xf32>
      %39 = math.tanh %38 : vector<8x128xf32>
      %40 = vector.extract_strided_slice %21 {offsets = [0, 384], sizes = [8, 128], strides = [1, 1]} : vector<8x512xf32> to vector<8x128xf32>
      %cst_23 = arith.constant 5.000000e-01 : f32
      %41 = vector.broadcast %cst_23 : f32 to vector<8x128xf32>
      %42 = arith.mulf %41, %40 : vector<8x128xf32>
      %43 = math.tanh %42 : vector<8x128xf32>
      %cst_24 = arith.constant 5.000000e-01 : f32
      %44 = vector.broadcast %cst_24 : f32 to vector<8x128xf32>
      %45 = arith.mulf %44, %43 : vector<8x128xf32>
      %cst_25 = arith.constant 5.000000e-01 : f32
      %46 = vector.broadcast %cst_25 : f32 to vector<8x128xf32>
      %47 = arith.addf %45, %46 : vector<8x128xf32>
      %48 = arith.mulf %37, %arg9 : vector<8x128xf32>
      %49 = arith.mulf %29, %39 : vector<8x128xf32>
      %50 = arith.addf %48, %49 : vector<8x128xf32>
      %51 = math.tanh %50 : vector<8x128xf32>
      %52 = arith.mulf %47, %51 : vector<8x128xf32>
      scf.yield %52, %50 : vector<8x128xf32>, vector<8x128xf32>
    }
    %c0_7 = arith.constant 0 : index
    %c0_8 = arith.constant 0 : index
    %11 = vector.load %arg5[%c0_7, %c0_8] : memref<8x128xf32, #tpu.memory_space<vmem>>, vector<8x128xf32>
    tpu.vector_store %arg5[%c0_7, %c0_8], %10#0 {strides = array<i32>} : memref<8x128xf32, #tpu.memory_space<vmem>>, vector<8x128xf32>,
    %c0_9 = arith.constant 0 : index
    %c0_10 = arith.constant 0 : index
    %12 = vector.load %arg6[%c0_9, %c0_10] : memref<8x128xf32, #tpu.memory_space<vmem>>, vector<8x128xf32>
    tpu.vector_store %arg6[%c0_9, %c0_10], %10#1 {strides = array<i32>} : memref<8x128xf32, #tpu.memory_space<vmem>>, vector<8x128xf32>,
    %c0_i32_11 = arith.constant 0 : i32
    %13 = arith.cmpi eq, %arg1, %c0_i32_11 : i32
    %14 = arith.extui %13 : i1 to i32
    %c0_i32_12 = arith.constant 0 : i32
    %15 = arith.cmpi ne, %14, %c0_i32_12 : i32
    scf.if %15 {
      %c0_13 = arith.constant 0 : index
      %c0_14 = arith.constant 0 : index
      %16 = vector.load %arg4[%c0_13, %c0_14] : memref<8x128xf32, #tpu.memory_space<vmem>>, vector<8x128xf32>
      tpu.vector_store %arg4[%c0_13, %c0_14], %10#0 {strides = array<i32>} : memref<8x128xf32, #tpu.memory_space<vmem>>, vector<8x128xf32>,
    } else {
    }
    return
  }
  func.func @transform_0(%arg0: i32, %arg1: i32) -> (i32, i32, i32) {
    %c0_i32 = arith.constant 0 : i32
    %c0_i32_0 = arith.constant 0 : i32
    return %arg1, %arg0, %c0_i32 : i32, i32, i32
  }
  func.func @transform_1(%arg0: i32, %arg1: i32) -> (i32, i32) {
    %c0_i32 = arith.constant 0 : i32
    %c0_i32_0 = arith.constant 0 : i32
    %c0_i32_1 = arith.constant 0 : i32
    return %c0_i32, %c0_i32_0 : i32, i32
  }
  func.func @transform_2(%arg0: i32, %arg1: i32) -> (i32, i32) {
    %c0_i32 = arith.constant 0 : i32
    %c0_i32_0 = arith.constant 0 : i32
    return %arg0, %c0_i32 : i32, i32
  }
}

</mosaic_0001>

<llo_original>
// kernel: lstm_model_forward.1
$region0: #{lstm_model_forward.1}
  #allocation0 [shape = 'u32[]', space=smem, size = 0x4, offset = 0x4, fixed_abs, tag = 'smem constant byte address 0x4 - core index']
  #allocation1 [shape = 'u32[144,128]{1,0:T(1,128)}', space=vmem, size = 0x12000, scoped, tag = 'internal scratch']
  #allocation2 [shape = 'f32[8,128]{1,0:T(8,128)}', space=vmem, size = 0x1000, scoped, tag = 'scratch operand']
  #allocation3 [shape = 'f32[8,128]{1,0:T(8,128)}', space=vmem, size = 0x1000, scoped, tag = 'scratch operand']
  %s0 = inlined_call_operand.vmem [shape: f32[8,8,512], index: 0, kind: input, shape index: {}]
  %s1 = inlined_call_operand.vmem [shape: f32[128,512], index: 1, kind: input, shape index: {}]
  %s2 = inlined_call_operand.vmem [shape: f32[8,128], index: 2, kind: output, shape index: {}]
  %s3 = sld [smem:[#allocation0]]
  $region33: #{lstm_model_forward.1} parent=0
    _
  %s5 = ssub.s32 1, %s3
  %s6 = scalar_select 0, %s5, %s3
  // Predicated region
  $region2: #{lstm_model_forward.1} parent=0 // pred_check
    _
  $region3: #{lstm_model_forward.1} parent=0 // pred_check_branch
    %8 = sbr.rel (0) target = $region5
  $region4: #{lstm_model_forward.1} parent=0 // pred_region
    _
  $region5: #{lstm_model_forward.1} parent=0 // pred_fallthru
    _
  // Predicated region
  $region6: #{lstm_model_forward.1} parent=0 // pred_check
    _
  $region7: #{lstm_model_forward.1} parent=0 // pred_check_branch
    %10 = sbr.rel (0) target = $region9
  $region8: #{lstm_model_forward.1} parent=0 // pred_region
    _
  $region9: #{lstm_model_forward.1} parent=0 // pred_fallthru
    _
  %p11 = scmp.eq.s32.totalorder 0, 0
  // Predicated region
  $region10: #{lstm_model_forward.1} parent=0 // pred_check
    %p12 = pneg %p11
  $region11: #{lstm_model_forward.1} parent=0 // pred_check_branch
    %14 = sbr.rel (%p12) target = $region13
  $region12: #{lstm_model_forward.1} parent=0 // pred_region
    %15 = vst [vmem:[#allocation2] sm:$0xff] 0.0
    %16 = vst [vmem:[#allocation3] sm:$0xff] 0.0
  $region13: #{lstm_model_forward.1} parent=0 // pred_fallthru
    _
  %v17 = vld [vmem:[#allocation2] sm:$0xff]
  %v18 = vld [vmem:[#allocation3] sm:$0xff]
  %s19 = smul.u32 0, 8
  %s20 = ssub.s32 8, %s19
  %p21 = scmp.lt.s32.totalorder %s20, 8
  %s22 = scalar_select %p21, %s20, 8
  // While loop
  $region14: #{lstm_model_forward.1} parent=0 // loop_pre_header
    _
  $region15: #{lstm_model_forward.1} parent=0 // loop_header
    %s24 = sphi 0, %s26
    %p25 = scmp.ge.s32.totalorder %s24, %s22
    %v29 = vphi %v17, %v265
    %v30 = vphi %v18, %v263
  $region16: #{lstm_model_forward.1} parent=0 // loop_header_branch
    %28 = sbr.rel (%p25) target = $region20
  $region17: #{lstm_model_forward.1} parent=0 // loop_body
    %s31 = smul.u32 %s24, 4
    %s32 = smul.addr %s31, 8
    %s33 = scalar_lea.vmem %s0, %s32
    %v34 = vld [vmem:[%s33] sm:$0xff]
    %v35 = vld [vmem:[%s33 + $0x8] sm:$0xff]
    %v36 = vld [vmem:[%s33 + $0x10] sm:$0xff]
    %v37 = vld [vmem:[%s33 + $0x18] sm:$0xff]
    %v38 = vld [vmem:[%s1] sm:$0xff]
    %v39 = vld [vmem:[%s1 + $0x8] sm:$0xff]
    %v40 = vld [vmem:[%s1 + $0x10] sm:$0xff]
    %v41 = vld [vmem:[%s1 + $0x18] sm:$0xff]
    %v42 = vld [vmem:[%s1 + $0x20] sm:$0xff]
    %v43 = vld [vmem:[%s1 + $0x28] sm:$0xff]
    %v44 = vld [vmem:[%s1 + $0x30] sm:$0xff]
    %v45 = vld [vmem:[%s1 + $0x38] sm:$0xff]
    %v46 = vld [vmem:[%s1 + $0x40] sm:$0xff]
    %v47 = vld [vmem:[%s1 + $0x48] sm:$0xff]
    %v48 = vld [vmem:[%s1 + $0x50] sm:$0xff]
    %v49 = vld [vmem:[%s1 + $0x58] sm:$0xff]
    %v50 = vld [vmem:[%s1 + $0x60] sm:$0xff]
    %v51 = vld [vmem:[%s1 + $0x68] sm:$0xff]
    %v52 = vld [vmem:[%s1 + $0x70] sm:$0xff]
    %v53 = vld [vmem:[%s1 + $0x78] sm:$0xff]
    %v54 = vld [vmem:[%s1 + $0x80] sm:$0xff]
    %v55 = vld [vmem:[%s1 + $0x88] sm:$0xff]
    %v56 = vld [vmem:[%s1 + $0x90] sm:$0xff]
    %v57 = vld [vmem:[%s1 + $0x98] sm:$0xff]
    %v58 = vld [vmem:[%s1 + $0xa0] sm:$0xff]
    %v59 = vld [vmem:[%s1 + $0xa8] sm:$0xff]
    %v60 = vld [vmem:[%s1 + $0xb0] sm:$0xff]
    %v61 = vld [vmem:[%s1 + $0xb8] sm:$0xff]
    %v62 = vld [vmem:[%s1 + $0xc0] sm:$0xff]
    %v63 = vld [vmem:[%s1 + $0xc8] sm:$0xff]
    %v64 = vld [vmem:[%s1 + $0xd0] sm:$0xff]
    %v65 = vld [vmem:[%s1 + $0xd8] sm:$0xff]
    %v66 = vld [vmem:[%s1 + $0xe0] sm:$0xff]
    %v67 = vld [vmem:[%s1 + $0xe8] sm:$0xff]
    %v68 = vld [vmem:[%s1 + $0xf0] sm:$0xff]
    %v69 = vld [vmem:[%s1 + $0xf8] sm:$0xff]
    %v70 = vld [vmem:[%s1 + $0x100] sm:$0xff]
    %v71 = vld [vmem:[%s1 + $0x108] sm:$0xff]
    %v72 = vld [vmem:[%s1 + $0x110] sm:$0xff]
    %v73 = vld [vmem:[%s1 + $0x118] sm:$0xff]
    %v74 = vld [vmem:[%s1 + $0x120] sm:$0xff]
    %v75 = vld [vmem:[%s1 + $0x128] sm:$0xff]
    %v76 = vld [vmem:[%s1 + $0x130] sm:$0xff]
    %v77 = vld [vmem:[%s1 + $0x138] sm:$0xff]
    %v78 = vld [vmem:[%s1 + $0x140] sm:$0xff]
    %v79 = vld [vmem:[%s1 + $0x148] sm:$0xff]
    %v80 = vld [vmem:[%s1 + $0x150] sm:$0xff]
    %v81 = vld [vmem:[%s1 + $0x158] sm:$0xff]
    %v82 = vld [vmem:[%s1 + $0x160] sm:$0xff]
    %v83 = vld [vmem:[%s1 + $0x168] sm:$0xff]
    %v84 = vld [vmem:[%s1 + $0x170] sm:$0xff]
    %v85 = vld [vmem:[%s1 + $0x178] sm:$0xff]
    %v86 = vld [vmem:[%s1 + $0x180] sm:$0xff]
    %v87 = vld [vmem:[%s1 + $0x188] sm:$0xff]
    %v88 = vld [vmem:[%s1 + $0x190] sm:$0xff]
    %v89 = vld [vmem:[%s1 + $0x198] sm:$0xff]
    %v90 = vld [vmem:[%s1 + $0x1a0] sm:$0xff]
    %v91 = vld [vmem:[%s1 + $0x1a8] sm:$0xff]
    %v92 = vld [vmem:[%s1 + $0x1b0] sm:$0xff]
    %v93 = vld [vmem:[%s1 + $0x1b8] sm:$0xff]
    %v94 = vld [vmem:[%s1 + $0x1c0] sm:$0xff]
    %v95 = vld [vmem:[%s1 + $0x1c8] sm:$0xff]
    %v96 = vld [vmem:[%s1 + $0x1d0] sm:$0xff]
    %v97 = vld [vmem:[%s1 + $0x1d8] sm:$0xff]
    %v98 = vld [vmem:[%s1 + $0x1e0] sm:$0xff]
    %v99 = vld [vmem:[%s1 + $0x1e8] sm:$0xff]
    %v100 = vld [vmem:[%s1 + $0x1f0] sm:$0xff]
    %v101 = vld [vmem:[%s1 + $0x1f8] sm:$0xff]
    %102 = vmatprep.subr.mxu0 %v39
    %103 = vmatpush1.msra.mxu0 %v38
    %104 = vmatprep.subr.mxu0 %v43
    %105 = vmatpush1.msra.mxu0 %v42
    %106 = vmatprep.subr.mxu0 %v47
    %107 = vmatpush1.msra.mxu0 %v46
    %108 = vmatprep.subr.mxu0 %v51
    %109 = vmatpush1.msra.mxu0 %v50
    %110 = vmatprep.subr.mxu0 %v55
    %111 = vmatpush1.msra.mxu0 %v54
    %112 = vmatprep.subr.mxu0 %v59
    %113 = vmatpush1.msra.mxu0 %v58
    %114 = vmatprep.subr.mxu0 %v63
    %115 = vmatpush1.msra.mxu0 %v62
    %116 = vmatprep.subr.mxu0 %v67
    %117 = vmatpush1.msra.mxu0 %v66
    %118 = vmatprep.subr.mxu0 %v71
    %119 = vmatpush1.msra.mxu0 %v70
    %120 = vmatprep.subr.mxu0 %v75
    %121 = vmatpush1.msra.mxu0 %v74
    %122 = vmatprep.subr.mxu0 %v79
    %123 = vmatpush1.msra.mxu0 %v78
    %124 = vmatprep.subr.mxu0 %v83
    %125 = vmatpush1.msra.mxu0 %v82
    %126 = vmatprep.subr.mxu0 %v87
    %127 = vmatpush1.msra.mxu0 %v86
    %128 = vmatprep.subr.mxu0 %v91
    %129 = vmatpush1.msra.mxu0 %v90
    %130 = vmatprep.subr.mxu0 %v95
    %131 = vmatpush1.msra.mxu0 %v94
    %132 = vmatprep.subr.mxu0 %v99
    %133 = vmatpush1.msra.mxu0 %v98
    %134 = vmatprep.subr.mxu0 0.0
    %135 = vmatpush1.msra.mxu0 0.0
    %136 = vmatprep.subr.mxu0 0.0
    %137 = vmatpush1.msra.mxu0 0.0
    %138 = vmatprep.subr.mxu0 0.0
    %139 = vmatpush1.msra.mxu0 0.0
    %140 = vmatprep.subr.mxu0 0.0
    %141 = vmatpush1.msra.mxu0 0.0
    %142 = vmatprep.subr.mxu0 0.0
    %143 = vmatpush1.msra.mxu0 0.0
    %144 = vmatprep.subr.mxu0 0.0
    %145 = vmatpush1.msra.mxu0 0.0
    %146 = vmatprep.subr.mxu0 0.0
    %147 = vmatpush1.msra.mxu0 0.0
    %148 = vmatprep.subr.mxu0 0.0
    %149 = vmatpush1.msra.mxu0 0.0
    %150 = vmatprep.subr.mxu0 0.0
    %151 = vmatpush1.msra.mxu0 0.0
    %152 = vmatprep.subr.mxu0 0.0
    %153 = vmatpush1.msra.mxu0 0.0
    %154 = vmatprep.subr.mxu0 0.0
    %155 = vmatpush1.msra.mxu0 0.0
    %156 = vmatprep.subr.mxu0 0.0
    %157 = vmatpush1.msra.mxu0 0.0
    %158 = vmatprep.subr.mxu0 0.0
    %159 = vmatpush1.msra.mxu0 0.0
    %160 = vmatprep.subr.mxu0 0.0
    %161 = vmatpush1.msra.mxu0 0.0
    %162 = vmatprep.subr.mxu0 0.0
    %163 = vmatpush1.msra.mxu0 0.0
    %164 = vmatprep.subr.mxu0 0.0
    %165 = vmatpush1.msra.mxu0 0.0
    %166 = vmatprep.mubr.f32.mxu0 0.0
    %167 = vmatmul.mubr.f32.gmra.mrb[0].mxu0 %v29
    %v168 = vpop.f32.mrb[0].mxu0
    %v169 = vadd.f32 0.0, %v168
    %v170 = vpop.f32.mrb[0].mxu0
    %v171 = vadd.f32 0.0, %v170
    %172 = vdwg.mxu0
    %173 = vmatprep.subr.mxu0 %v41
    %174 = vmatpush1.msra.mxu0 %v40
    %175 = vmatprep.subr.mxu0 %v45
    %176 = vmatpush1.msra.mxu0 %v44
    %177 = vmatprep.subr.mxu0 %v49
    %178 = vmatpush1.msra.mxu0 %v48
    %179 = vmatprep.subr.mxu0 %v53
    %180 = vmatpush1.msra.mxu0 %v52
    %181 = vmatprep.subr.mxu0 %v57
    %182 = vmatpush1.msra.mxu0 %v56
    %183 = vmatprep.subr.mxu0 %v61
    %184 = vmatpush1.msra.mxu0 %v60
    %185 = vmatprep.subr.mxu0 %v65
    %186 = vmatpush1.msra.mxu0 %v64
    %187 = vmatprep.subr.mxu0 %v69
    %188 = vmatpush1.msra.mxu0 %v68
    %189 = vmatprep.subr.mxu0 %v73
    %190 = vmatpush1.msra.mxu0 %v72
    %191 = vmatprep.subr.mxu0 %v77
    %192 = vmatpush1.msra.mxu0 %v76
    %193 = vmatprep.subr.mxu0 %v81
    %194 = vmatpush1.msra.mxu0 %v80
    %195 = vmatprep.subr.mxu0 %v85
    %196 = vmatpush1.msra.mxu0 %v84
    %197 = vmatprep.subr.mxu0 %v89
    %198 = vmatpush1.msra.mxu0 %v88
    %199 = vmatprep.subr.mxu0 %v93
    %200 = vmatpush1.msra.mxu0 %v92
    %201 = vmatprep.subr.mxu0 %v97
    %202 = vmatpush1.msra.mxu0 %v96
    %203 = vmatprep.subr.mxu0 %v101
    %204 = vmatpush1.msra.mxu0 %v100
    %205 = vmatprep.subr.mxu0 0.0
    %206 = vmatpush1.msra.mxu0 0.0
    %207 = vmatprep.subr.mxu0 0.0
    %208 = vmatpush1.msra.mxu0 0.0
    %209 = vmatprep.subr.mxu0 0.0
    %210 = vmatpush1.msra.mxu0 0.0
    %211 = vmatprep.subr.mxu0 0.0
    %212 = vmatpush1.msra.mxu0 0.0
    %213 = vmatprep.subr.mxu0 0.0
    %214 = vmatpush1.msra.mxu0 0.0
    %215 = vmatprep.subr.mxu0 0.0
    %216 = vmatpush1.msra.mxu0 0.0
    %217 = vmatprep.subr.mxu0 0.0
    %218 = vmatpush1.msra.mxu0 0.0
    %219 = vmatprep.subr.mxu0 0.0
    %220 = vmatpush1.msra.mxu0 0.0
    %221 = vmatprep.subr.mxu0 0.0
    %222 = vmatpush1.msra.mxu0 0.0
    %223 = vmatprep.subr.mxu0 0.0
    %224 = vmatpush1.msra.mxu0 0.0
    %225 = vmatprep.subr.mxu0 0.0
    %226 = vmatpush1.msra.mxu0 0.0
    %227 = vmatprep.subr.mxu0 0.0
    %228 = vmatpush1.msra.mxu0 0.0
    %229 = vmatprep.subr.mxu0 0.0
    %230 = vmatpush1.msra.mxu0 0.0
    %231 = vmatprep.subr.mxu0 0.0
    %232 = vmatpush1.msra.mxu0 0.0
    %233 = vmatprep.subr.mxu0 0.0
    %234 = vmatpush1.msra.mxu0 0.0
    %235 = vmatprep.subr.mxu0 0.0
    %236 = vmatpush1.msra.mxu0 0.0
    %237 = vmatprep.mubr.f32.mxu0 0.0
    %238 = vmatmul.mubr.f32.gmra.mrb[0].mxu0 %v29
    %v239 = vpop.f32.mrb[0].mxu0
    %v240 = vadd.f32 0.0, %v239
    %v241 = vpop.f32.mrb[0].mxu0
    %v242 = vadd.f32 0.0, %v241
    %243 = vdwg.mxu0
    %v244 = vadd.f32 %v34, %v169
    %v245 = vadd.f32 %v35, %v171
    %v246 = vadd.f32 %v36, %v240
    %v247 = vadd.f32 %v37, %v242
    %v248 = vmul.f32 %v244, 0.5
    %v249 = vtanh.pop %v248
    %v250 = vmul.f32 %v249, 0.5
    %v251 = vadd.f32 %v250, 0.5
    %v252 = vmul.f32 %v245, 0.5
    %v253 = vtanh.pop %v252
    %v254 = vmul.f32 %v253, 0.5
    %v255 = vadd.f32 %v254, 0.5
    %v256 = vtanh.pop %v246
    %v257 = vmul.f32 %v247, 0.5
    %v258 = vtanh.pop %v257
    %v259 = vmul.f32 %v258, 0.5
    %v260 = vadd.f32 %v259, 0.5
    %v261 = vmul.f32 %v255, %v30
    %v262 = vmul.f32 %v251, %v256
    %v263 = vadd.f32 %v261, %v262
    %v264 = vtanh.pop %v263
    %v265 = vmul.f32 %v260, %v264
  $region18: #{lstm_model_forward.1} parent=0 // loop_footer
    %s26 = sadd.s32 %s24, 1
  $region19: #{lstm_model_forward.1} parent=0 // loop_footer_branch
    %23 = sbr.rel target = $region15
  $region20: #{lstm_model_forward.1} parent=0 // loop_exit
    _
  %266 = vst [vmem:[#allocation2] sm:$0xff] %v29
  %267 = vst [vmem:[#allocation3] sm:$0xff] %v30
  // Predicated region
  $region21: #{lstm_model_forward.1} parent=0 // pred_check
    %p268 = pneg %p11
  $region22: #{lstm_model_forward.1} parent=0 // pred_check_branch
    %270 = sbr.rel (%p268) target = $region24
  $region23: #{lstm_model_forward.1} parent=0 // pred_region
    %271 = vst [vmem:[%s2] sm:$0xff] %v29
  $region24: #{lstm_model_forward.1} parent=0 // pred_fallthru
    _
  // Predicated region
  $region25: #{lstm_model_forward.1} parent=0 // pred_check
    _
  $region26: #{lstm_model_forward.1} parent=0 // pred_check_branch
    %273 = sbr.rel (0) target = $region28
  $region27: #{lstm_model_forward.1} parent=0 // pred_region
    _
  $region28: #{lstm_model_forward.1} parent=0 // pred_fallthru
    _
  // Predicated region
  $region29: #{lstm_model_forward.1} parent=0 // pred_check
    _
  $region30: #{lstm_model_forward.1} parent=0 // pred_check_branch
    %275 = sbr.rel (0) target = $region32
  $region31: #{lstm_model_forward.1} parent=0 // pred_region
    _
  $region32: #{lstm_model_forward.1} parent=0 // pred_fallthru
    _

</llo_original>
